<compile_context>
chip_gen: v7x
topology: tpu7x:2x2x1
jax: 0.10.0
libtpu: 0.0.40
codegen_flags: <defaults>
</compile_context>

<pallas_src>
import functools

import jax
import jax.numpy as jnp
from jax.experimental import pallas as pl
from jax.experimental.pallas import tpu as pltpu


def _simcc_mse_kernel(pred_ref, gt_ref, out_ref, acc_ref, *, scale):
    """Unweighted variant: streaming sum of (p - g)^2 over batch chunks."""
    s = pl.program_id(1)

    @pl.when(s == 0)
    def _():
        acc_ref[...] = jnp.zeros_like(acc_ref)

    p = pred_ref[...].astype(jnp.float32)   # (Bt, K, 2L)
    g = gt_ref[...].astype(jnp.float32)     # (Bt, K, 2L)
    d = p - g
    # Elementwise accumulation only (VPU); cross-lane reduce deferred to epilogue.
    acc_ref[...] = acc_ref[...] + jnp.sum(d * d, axis=0)

    @pl.when(s == pl.num_programs(1) - 1)
    def _():
        out_ref[0] = jnp.sum(acc_ref[...], keepdims=True) * scale


def _simcc_mse_kernel_weighted(pred_ref, gt_ref, w_ref, out_ref, acc_ref, *,
                               scale):
    """Weighted variant: matches MSE(hp * w, hg * w) of the PyTorch module."""
    s = pl.program_id(1)

    @pl.when(s == 0)
    def _():
        acc_ref[...] = jnp.zeros_like(acc_ref)

    p = pred_ref[...].astype(jnp.float32)   # (Bt, K, 2L)
    g = gt_ref[...].astype(jnp.float32)     # (Bt, K, 2L)
    w = w_ref[...].astype(jnp.float32)      # (Bt, K, 1)
    d = p * w - g * w                       # same op order as the reference
    acc_ref[...] = acc_ref[...] + jnp.sum(d * d, axis=0)

    @pl.when(s == pl.num_programs(1) - 1)
    def _():
        out_ref[0] = jnp.sum(acc_ref[...], keepdims=True) * scale


def _largest_divisor_under(n, bytes_per_unit, max_bytes):
    """Largest divisor of n whose block stays under max_bytes (>= 1)."""
    best = 1
    for cand in range(1, n + 1):
        if n % cand == 0 and cand * bytes_per_unit <= max_bytes:
            best = cand
    return best


def joints_mse_loss_simcc(output, target, target_weight=None, *,
                          use_target_weight=False, loss_weight=1.0):
    """JAX/Pallas equivalent of JointsMSELossSimCC.forward."""
    output = jnp.asarray(output)
    target = jnp.asarray(target)
    batch_size = output.shape[1]
    num_joints = output.shape[2]

    # NOTE: reshaping the WHOLE stacked (2, B, K, L) tensor to (B, K, 2L)
    # mixes x/y logits across the batch dim; this matches the PyTorch module
    # verbatim.  Row-major reshape => free view, no HBM pass, no transpose.
    pred = jnp.reshape(output, (batch_size, num_joints, -1))
    gt = jnp.reshape(target, (batch_size, num_joints, -1))
    flat = pred.shape[-1]                                   # = 2L

    # v7x megacore: split the batch across 2 parallel slices when possible.
    num_parallel = 2 if (batch_size % 2 == 0 and batch_size >= 2) else 1
    rows_per_slice = batch_size // num_parallel

    # Block sizing: <= ~2 MiB per input block keeps
    # 2 inputs x 2 pipeline buffers + weight + scratch well inside the default
    # scoped-VMEM limits (16 MiB v5e / 32 MiB v6e,v7x).
    bytes_per_row = num_joints * flat * jnp.dtype(pred.dtype).itemsize
    block_rows = _largest_divisor_under(rows_per_slice, bytes_per_row,
                                        2 * 1024 * 1024)
    steps = rows_per_slice // block_rows

    # Global mean denominator: each per-joint MSE is over B*2L elements and the
    # K joint means are averaged, so the whole thing is one global scale.
    scale = float(loss_weight) / float(batch_size * num_joints * flat)

    def data_map(p, s):
        return (p * steps + s, 0, 0)

    in_arrays = [pred, gt]
    in_specs = [
        pl.BlockSpec((block_rows, num_joints, flat), data_map),
        pl.BlockSpec((block_rows, num_joints, flat), data_map),
    ]
    if use_target_weight:
        w = jnp.reshape(target_weight, (batch_size, num_joints, 1))
        in_arrays.append(w)
        in_specs.append(pl.BlockSpec((block_rows, num_joints, 1), data_map))
        kernel = functools.partial(_simcc_mse_kernel_weighted, scale=scale)
    else:
        # Separate unweighted kernel: no ones tensor, no extra input stream.
        kernel = functools.partial(_simcc_mse_kernel, scale=scale)

    partials = pl.pallas_call(
        kernel,
        out_shape=jax.ShapeDtypeStruct((num_parallel, 1, 1), jnp.float32),
        grid_spec=pltpu.PrefetchScalarGridSpec(
            num_scalar_prefetch=0,
            grid=(num_parallel, steps),
            in_specs=in_specs,
            out_specs=pl.BlockSpec((1, 1, 1), lambda p, s: (p, 0, 0)),
            scratch_shapes=[pltpu.VMEM((num_joints, flat), jnp.float32)],
        ),
        compiler_params=pltpu.CompilerParams(
            dimension_semantics=("parallel", "arbitrary")),
    )(*in_arrays)

    # Sum the per-slice partials (2 scalars at most) outside the kernel.
    return jnp.sum(partials[:, 0, 0])


def _reference(output, target, target_weight, use_target_weight, loss_weight):
    """Pure-JAX transcription of the PyTorch forward, for verification."""
    output_x = output[0]
    batch_size, num_joints = output_x.shape[0], output_x.shape[1]
    pred = jnp.reshape(output, (batch_size, num_joints, -1))
    gt = jnp.reshape(target, (batch_size, num_joints, -1))
    loss = 0.0
    for idx in range(num_joints):
        hp = pred[:, idx]
        hg = gt[:, idx]
        if use_target_weight:
            w = target_weight[:, idx]
            loss = loss + jnp.mean((hp * w - hg * w) ** 2)
        else:
            loss = loss + jnp.mean((hp - hg) ** 2)
    return loss / num_joints * loss_weight


if __name__ == "__main__":
    key = jax.random.PRNGKey(0)
    k1, k2, k3 = jax.random.split(key, 3)

    B, K, L = 2, 4, 16  # batch, num_joints, SimCC length per axis
    output = jax.random.normal(k1, (2, B, K, L), dtype=jnp.float32)
    target = jax.random.normal(k2, (2, B, K, L), dtype=jnp.float32)
    target_weight = jax.random.uniform(k3, (B, K, 1), dtype=jnp.float32)

    for use_tw in (False, True):
        loss = joints_mse_loss_simcc(
            output, target, target_weight,
            use_target_weight=use_tw, loss_weight=1.0)
        loss = jax.block_until_ready(loss)
        ref = _reference(output, target, target_weight, use_tw, 1.0)
        assert jnp.allclose(loss, ref, rtol=1e-5, atol=1e-6), (loss, ref)

    print("KERNEL_OK")
</pallas_src>

<mosaic_0001>
module attributes {stable_mosaic.version = 11 : i64} {
  func.func @_simcc_mse_kernel(%arg0: i32, %arg1: i32, %arg2: memref<1x4x32xf32, #tpu.memory_space<vmem>>, %arg3: memref<1x4x32xf32, #tpu.memory_space<vmem>>, %arg4: memref<1x1x1xf32, #tpu.memory_space<vmem>>, %arg5: memref<4x32xf32, #tpu.memory_space<vmem>>) attributes {dimension_semantics = [#tpu.dimension_semantics<parallel>, #tpu.dimension_semantics<arbitrary>], iteration_bounds = array<i64: 2, 1>, scalar_prefetch = 0 : i64, scratch_operands = 1 : i64, tpu.core_type = #tpu.core_type<tc>, window_params = [{transform_indices = @transform_0, window_bounds = array<i64: 1, 4, 32>}, {transform_indices = @transform_1, window_bounds = array<i64: 1, 4, 32>}, {transform_indices = @transform_2, window_bounds = array<i64: 1, 1, 1>}]} {
    %c0_i32 = arith.constant 0 : i32
    %0 = arith.cmpi eq, %arg1, %c0_i32 : i32
    %1 = arith.extui %0 : i1 to i32
    %c0_i32_0 = arith.constant 0 : i32
    %2 = arith.cmpi ne, %1, %c0_i32_0 : i32
    scf.if %2 {
      %cst_12 = arith.constant 0.000000e+00 : f32
      %14 = vector.broadcast %cst_12 : f32 to vector<4x32xf32>
      %c0_13 = arith.constant 0 : index
      %c0_14 = arith.constant 0 : index
      %15 = vector.load %arg5[%c0_13, %c0_14] : memref<4x32xf32, #tpu.memory_space<vmem>>, vector<4x32xf32>
      tpu.vector_store %arg5[%c0_13, %c0_14], %14 {strides = array<i32>} : memref<4x32xf32, #tpu.memory_space<vmem>>, vector<4x32xf32>,
    } else {
    }
    %c0 = arith.constant 0 : index
    %c0_1 = arith.constant 0 : index
    %c0_2 = arith.constant 0 : index
    %3 = vector.load %arg2[%c0, %c0_1, %c0_2] : memref<1x4x32xf32, #tpu.memory_space<vmem>>, vector<1x4x32xf32>
    %c0_3 = arith.constant 0 : index
    %c0_4 = arith.constant 0 : index
    %c0_5 = arith.constant 0 : index
    %4 = vector.load %arg3[%c0_3, %c0_4, %c0_5] : memref<1x4x32xf32, #tpu.memory_space<vmem>>, vector<1x4x32xf32>
    %5 = arith.subf %3, %4 : vector<1x4x32xf32>
    %c0_6 = arith.constant 0 : index
    %c0_7 = arith.constant 0 : index
    %6 = vector.load %arg5[%c0_6, %c0_7] : memref<4x32xf32, #tpu.memory_space<vmem>>, vector<4x32xf32>
    %7 = arith.mulf %5, %5 : vector<1x4x32xf32>
    %cst = arith.constant dense<0.000000e+00> : vector<4x32xf32>
    %8 = vector.multi_reduction <add>, %7, %cst [0] : vector<1x4x32xf32> to vector<4x32xf32>
    %9 = arith.addf %6, %8 : vector<4x32xf32>
    %c0_8 = arith.constant 0 : index
    %c0_9 = arith.constant 0 : index
    %10 = vector.load %arg5[%c0_8, %c0_9] : memref<4x32xf32, #tpu.memory_space<vmem>>, vector<4x32xf32>
    tpu.vector_store %arg5[%c0_8, %c0_9], %9 {strides = array<i32>} : memref<4x32xf32, #tpu.memory_space<vmem>>, vector<4x32xf32>,
    %c0_i32_10 = arith.constant 0 : i32
    %11 = arith.cmpi eq, %arg1, %c0_i32_10 : i32
    %12 = arith.extui %11 : i1 to i32
    %c0_i32_11 = arith.constant 0 : i32
    %13 = arith.cmpi ne, %12, %c0_i32_11 : i32
    scf.if %13 {
      %c0_12 = arith.constant 0 : index
      %c0_13 = arith.constant 0 : index
      %14 = vector.load %arg5[%c0_12, %c0_13] : memref<4x32xf32, #tpu.memory_space<vmem>>, vector<4x32xf32>
      %15 = vector.shape_cast %14 : vector<4x32xf32> to vector<1x4x32xf32>
      %cst_14 = arith.constant dense<0.000000e+00> : vector<1xf32>
      %16 = vector.multi_reduction <add>, %15, %cst_14 [1, 2] : vector<1x4x32xf32> to vector<1xf32>
      %17 = vector.shape_cast %16 : vector<1xf32> to vector<1x1x1xf32>
      %18 = vector.extract %17[0, 0, 0] : f32 from vector<1x1x1xf32>
      %19 = vector.broadcast %18 : f32 to vector<1x1xf32>
      %cst_15 = arith.constant 3.906250e-03 : f32
      %20 = vector.broadcast %cst_15 : f32 to vector<1x1xf32>
      %21 = arith.mulf %19, %20 : vector<1x1xf32>
      %c0_16 = arith.constant 0 : index
      %c0_17 = arith.constant 0 : index
      %c0_18 = arith.constant 0 : index
      %22 = vector.load %arg4[%c0_16, %c0_17, %c0_18] : memref<1x1x1xf32, #tpu.memory_space<vmem>>, vector<1x1x1xf32>
      %23 = vector.shape_cast %22 : vector<1x1x1xf32> to vector<1x1xf32>
      %24 = vector.shape_cast %21 : vector<1x1xf32> to vector<1x1x1xf32>
      tpu.vector_store %arg4[%c0_16, %c0_17, %c0_18], %24 {strides = array<i32>} : memref<1x1x1xf32, #tpu.memory_space<vmem>>, vector<1x1x1xf32>,
    } else {
    }
    return
  }
  func.func @transform_0(%arg0: i32, %arg1: i32) -> (i32, i32, i32) {
    %c1_i32 = arith.constant 1 : i32
    %0 = arith.muli %arg0, %c1_i32 : i32
    %1 = arith.addi %0, %arg1 : i32
    %c0_i32 = arith.constant 0 : i32
    %c0_i32_0 = arith.constant 0 : i32
    %c0_i32_1 = arith.constant 0 : i32
    return %1, %c0_i32, %c0_i32_0 : i32, i32, i32
  }
  func.func @transform_1(%arg0: i32, %arg1: i32) -> (i32, i32, i32) {
    %c1_i32 = arith.constant 1 : i32
    %0 = arith.muli %arg0, %c1_i32 : i32
    %1 = arith.addi %0, %arg1 : i32
    %c0_i32 = arith.constant 0 : i32
    %c0_i32_0 = arith.constant 0 : i32
    %c0_i32_1 = arith.constant 0 : i32
    return %1, %c0_i32, %c0_i32_0 : i32, i32, i32
  }
  func.func @transform_2(%arg0: i32, %arg1: i32) -> (i32, i32, i32) {
    %c0_i32 = arith.constant 0 : i32
    %c0_i32_0 = arith.constant 0 : i32
    %c0_i32_1 = arith.constant 0 : i32
    return %arg0, %c0_i32, %c0_i32_0 : i32, i32, i32
  }
}

</mosaic_0001>

<llo_original>
// kernel: tpu_custom_call.1
$region0: #{tpu_custom_call.1}
  #allocation0 [shape = 'u32[]', space=smem, size = 0x4, offset = 0x4, fixed_abs, tag = 'smem constant byte address 0x4 - core index']
  #allocation1 [shape = 'u32[144,128]{1,0:T(1,128)}', space=vmem, size = 0x12000, scoped, tag = 'internal scratch']
  #allocation2 [shape = 'f32[4,32]{1,0:T(4,128)}', space=vmem, size = 0x800, scoped, tag = 'scratch operand']
  %s0 = inlined_call_operand.hbm [shape: f32[2,4,32], index: 0, kind: input, shape index: {}]
  %s1 = inlined_call_operand.hbm [shape: f32[2,4,32], index: 1, kind: input, shape index: {}]
  %s2 = inlined_call_operand.vmem [shape: f32[2,1,1], index: 2, kind: output, shape index: {}]
  %s3 = sld [smem:[#allocation0]]
  $region57: #{tpu_custom_call.1} parent=0
    _
  %s5 = ssub.s32 1, %s3
  %s6 = scalar_select 0, %s5, %s3
  $region1: #{tpu_custom_call.1} parent=0
    #allocation3 [shape = 'u8[4096]{0}', space=vmem, size = 0x1000, scoped, tag = 'input window, operand 0']
    #allocation4 [shape = 's32[2]{0}', space=sflag, size = 0x8, scoped, tag = 'scoped memory for tpu_custom_call.1']
    #allocation5 [shape = 'u8[4096]{0}', space=vmem, size = 0x1000, scoped, tag = 'input window, operand 1']
    #allocation6 [shape = 's32[2]{0}', space=sflag, size = 0x8, scoped, tag = 'scoped memory for tpu_custom_call.1']
    %7 = vsyncpa [#allocation4], 0
    %s8 = scalar_lea.sflag [#allocation4], 1
    %9 = vsyncpa %s8, 0
    %10 = vsyncpa [#allocation6], 0
    %s11 = scalar_lea.sflag [#allocation6], 1
    %12 = vsyncpa %s11, 0
    loop: start=0, step=1, limit=4
    $region2: #{tpu_custom_call.1} parent=1 // loop_pre_header
      _
    $region3: #{tpu_custom_call.1} parent=1 // loop_header
      %s14 = sphi 0, %s18
      %p15 = scmp.ge.s32.totalorder %s14, 4
      %s21 = sphi 0, %s33
      %s22 = sphi 0, %s29
      %s23 = sphi 0, %s21
      %s24 = sphi 0, %s22
      %s25 = sphi 0, %s23
      %s26 = sphi 0, %s24
      %s38 = sphi 0, %s40
      %s41 = sphi 0, %s38
      %s42 = sphi 0, %s41
      %s58 = sphi 0, %s42
      %s66 = sphi 0, %s68
      %s69 = sphi 0, %s66
      %s70 = sphi 0, %s69
      %s86 = sphi 0, %s70
      %s92 = sphi 0, %s94
      %s95 = sphi 0, %s92
      %s96 = sphi 0, %s95
      %s112 = sphi 0, %s96
    $region4: #{tpu_custom_call.1} parent=1 // loop_header_branch
      %17 = sbr.rel (%p15) target = $region8
    $region5: #{tpu_custom_call.1} parent=1 // loop_body
      %s19 = ssub.s32 %s14, 1
      %s20 = ssub.s32 %s14, 2
      %s27 = sadd.s32 1, %s22
      %p28 = scmp.ge.s32.totalorder %s27, 1
      %s29 = scalar_select %p28, 0, %s27
      %s30 = sadd.s32 1, %s21
      %s31 = scalar_select %p28, %s30, %s21
      %p32 = scmp.ge.s32.totalorder %s31, 2
      %s33 = scalar_select %p32, 0, %s31
      %s34 = sadd.s32 %s21, %s22
      %s35 = sadd.s32 %s33, %s29
      %s36 = ssub.s32 %s34, %s35
      %p37 = scmp.eq.s32.totalorder %s36, 0
      %s39 = sadd.s32 %s38, 1
      %s40 = scalar_select %p37, %s38, %s39
      %p43 = pneg %p37
      %p44 = scmp.eq.s32.totalorder %s14, 1
      %p45 = por %p43, %p44
      %p46 = scmp.ne.s32.totalorder %s38, %s41
      %p47 = scmp.eq.s32.totalorder %s14, 0
      %p48 = por %p46, %p47
      %p49 = scmp.ne.s32.totalorder %s38, %s41
      %p50 = scmp.eq.s32.totalorder %s19, 1
      %p51 = por %p49, %p50
      %p52 = scmp.ne.s32.totalorder %s41, %s42
      %p53 = scmp.eq.s32.totalorder %s19, 0
      %p54 = por %p52, %p53
      %p55 = scmp.ne.s32.totalorder %s41, %s42
      %p56 = scmp.eq.s32.totalorder %s20, 1
      %p57 = por %p55, %p56
      %p59 = scmp.ne.s32.totalorder %s42, %s58
      %p60 = scmp.eq.s32.totalorder %s20, 0
      %p61 = por %p59, %p60
      %s62 = sadd.s32 %s21, %s22
      %s63 = sadd.s32 %s33, %s29
      %s64 = ssub.s32 %s62, %s63
      %p65 = scmp.eq.s32.totalorder %s64, 0
      %s67 = sadd.s32 %s66, 1
      %s68 = scalar_select %p65, %s66, %s67
      %p71 = pneg %p65
      %p72 = scmp.eq.s32.totalorder %s14, 1
      %p73 = por %p71, %p72
      %p74 = scmp.ne.s32.totalorder %s66, %s69
      %p75 = scmp.eq.s32.totalorder %s14, 0
      %p76 = por %p74, %p75
      %p77 = scmp.ne.s32.totalorder %s66, %s69
      %p78 = scmp.eq.s32.totalorder %s19, 1
      %p79 = por %p77, %p78
      %p80 = scmp.ne.s32.totalorder %s69, %s70
      %p81 = scmp.eq.s32.totalorder %s19, 0
      %p82 = por %p80, %p81
      %p83 = scmp.ne.s32.totalorder %s69, %s70
      %p84 = scmp.eq.s32.totalorder %s20, 1
      %p85 = por %p83, %p84
      %p87 = scmp.ne.s32.totalorder %s70, %s86
      %p88 = scmp.eq.s32.totalorder %s20, 0
      %p89 = por %p87, %p88
      %s90 = ssub.s32 %s21, %s33
      %p91 = scmp.eq.s32.totalorder %s90, 0
      %s93 = sadd.s32 %s92, 1
      %s94 = scalar_select %p91, %s92, %s93
      %p97 = pneg %p91
      %p98 = scmp.eq.s32.totalorder %s14, 1
      %p99 = por %p97, %p98
      %p100 = scmp.ne.s32.totalorder %s92, %s95
      %p101 = scmp.eq.s32.totalorder %s14, 0
      %p102 = por %p100, %p101
      %p103 = scmp.ne.s32.totalorder %s92, %s95
      %p104 = scmp.eq.s32.totalorder %s19, 1
      %p105 = por %p103, %p104
      %p106 = scmp.ne.s32.totalorder %s95, %s96
      %p107 = scmp.eq.s32.totalorder %s19, 0
      %p108 = por %p106, %p107
      %p109 = scmp.ne.s32.totalorder %s95, %s96
      %p110 = scmp.eq.s32.totalorder %s20, 1
      %p111 = por %p109, %p110
      %p113 = scmp.ne.s32.totalorder %s96, %s112
      %p114 = scmp.eq.s32.totalorder %s20, 0
      %p115 = por %p113, %p114
      %p116 = scmp.le.s32.totalorder 1, %s14
      %p117 = scmp.lt.s32.totalorder %s14, 3
      %p118 = pnand %p116, %p117
      %p119 = pneg %p118
      // Predicated region
      $region9: #{tpu_custom_call.1} parent=5 // pred_check
        _
      $region10: #{tpu_custom_call.1} parent=5 // pred_check_branch
        %121 = sbr.rel (%p118) target = $region12
      $region11: #{tpu_custom_call.1} parent=5 // pred_region
        %s122 = ssub.s32 %s14, 1
      $region12: #{tpu_custom_call.1} parent=5 // pred_fallthru
        _
      %p123 = scmp.lt.s32.totalorder %s14, 2
      // Predicated region
      $region13: #{tpu_custom_call.1} parent=5 // pred_check
        %p124 = pneg %p123
      $region14: #{tpu_custom_call.1} parent=5 // pred_check_branch
        %126 = sbr.rel (%p124) target = $region16
      $region15: #{tpu_custom_call.1} parent=5 // pred_region
        // Predicated region
        $region17: #{tpu_custom_call.1} parent=15 // pred_check
          %p127 = pneg %p48
        $region18: #{tpu_custom_call.1} parent=15 // pred_check_branch
          %129 = sbr.rel (%p127) target = $region20
        $region19: #{tpu_custom_call.1} parent=15 // pred_region
          %s130 = sand.u32 %s38, 1
          %s131 = scalar_lea.sflag [#allocation4], %s130
          %s132 = sand.u32 %s38, 1
          %s133 = smul.addr %s132, 4
          %s134 = scalar_lea.vmem [#allocation3], %s133
          %s135 = sadd.s32 %s21, %s22
          %s137 = ssub.s32 64, 64
          %138 = vsyncadd %s131, %s137
          %s139 = smul.addr %s135, 64
          %s140 = scalar_lea.hbm %s0, %s139
          %s142 = sshll.u32 %s134, 4
          %s143 = int_to_ptr.vmem [resolvable:$true] %s142
          %145 = dma.hbm_to_vmem [thread:$0]  %s140, 64, %s143, %s131
        $region20: #{tpu_custom_call.1} parent=15 // pred_fallthru
          _
        // Predicated region
        $region21: #{tpu_custom_call.1} parent=15 // pred_check
          %p146 = pneg %p76
        $region22: #{tpu_custom_call.1} parent=15 // pred_check_branch
          %148 = sbr.rel (%p146) target = $region24
        $region23: #{tpu_custom_call.1} parent=15 // pred_region
          %s149 = sand.u32 %s66, 1
          %s150 = scalar_lea.sflag [#allocation6], %s149
          %s151 = sand.u32 %s66, 1
          %s152 = smul.addr %s151, 4
          %s153 = scalar_lea.vmem [#allocation5], %s152
          %s154 = sadd.s32 %s21, %s22
          %s156 = ssub.s32 64, 64
          %157 = vsyncadd %s150, %s156
          %s158 = smul.addr %s154, 64
          %s159 = scalar_lea.hbm %s1, %s158
          %s161 = sshll.u32 %s153, 4
          %s162 = int_to_ptr.vmem [resolvable:$true] %s161
          %164 = dma.hbm_to_vmem [thread:$0]  %s159, 64, %s162, %s150
        $region24: #{tpu_custom_call.1} parent=15 // pred_fallthru
          _
      $region16: #{tpu_custom_call.1} parent=5 // pred_fallthru
        _
      %p165 = scmp.le.s32.totalorder 1, %s14
      %p166 = scmp.lt.s32.totalorder %s14, 3
      %p167 = pnand %p165, %p166
      %p168 = pneg %p167
      // Predicated region
      $region25: #{tpu_custom_call.1} parent=5 // pred_check
        _
      $region26: #{tpu_custom_call.1} parent=5 // pred_check_branch
        %170 = sbr.rel (%p167) target = $region28
      $region27: #{tpu_custom_call.1} parent=5 // pred_region
        %s171 = ssub.s32 %s14, 1
        %s172 = sand.u32 %s41, 1
        %s173 = scalar_lea.sflag [#allocation4], %s172
        %s174 = sand.u32 %s41, 1
        %s175 = smul.addr %s174, 4
        %s176 = scalar_lea.vmem [#allocation3], %s175
        // Predicated region
        $region29: #{tpu_custom_call.1} parent=27 // pred_check
          %p177 = pneg %p54
        $region30: #{tpu_custom_call.1} parent=27 // pred_check_branch
          %179 = sbr.rel (%p177) target = $region32
        $region31: #{tpu_custom_call.1} parent=27 // pred_region
          %180 = dma.done %s173, 64
        $region32: #{tpu_custom_call.1} parent=27 // pred_fallthru
          _
        %s181 = sand.u32 %s69, 1
        %s182 = scalar_lea.sflag [#allocation6], %s181
        %s183 = sand.u32 %s69, 1
        %s184 = smul.addr %s183, 4
        %s185 = scalar_lea.vmem [#allocation5], %s184
        // Predicated region
        $region33: #{tpu_custom_call.1} parent=27 // pred_check
          %p186 = pneg %p82
        $region34: #{tpu_custom_call.1} parent=27 // pred_check_branch
          %188 = sbr.rel (%p186) target = $region36
        $region35: #{tpu_custom_call.1} parent=27 // pred_region
          %189 = dma.done %s182, 64
        $region36: #{tpu_custom_call.1} parent=27 // pred_fallthru
          _
        %s190 = sand.u32 %s41, 1
        %s191 = scalar_lea.sflag [#allocation4], %s190
        %s192 = sand.u32 %s41, 1
        %s193 = smul.addr %s192, 4
        %s194 = scalar_lea.vmem [#allocation3], %s193
        %p195 = pneg %p54
        %p196 = pneg %p51
        %s197 = sand.u32 %s69, 1
        %s198 = scalar_lea.sflag [#allocation6], %s197
        %s199 = sand.u32 %s69, 1
        %s200 = smul.addr %s199, 4
        %s201 = scalar_lea.vmem [#allocation5], %s200
        %p202 = pneg %p82
        %p203 = pneg %p79
        %p204 = pneg %p108
        %p205 = pneg %p105
        %p206 = scmp.lt.s32.totalorder %s23, 1
        %s207 = scalar_select %p206, %s23, 1
        %s208 = scalar_lea.vmem %s2, %s207
        %s209 = sadd.s32 %s23, %s24
        %s210 = sadd.s32 %s23, %s24
        %p211 = scmp.lt.s32.totalorder %s23, 1
        %s212 = scalar_select %p211, %s23, 1
        %s213 = scalar_lea.vmem %s2, %s212
        %p214 = scmp.eq.s32.totalorder %s24, 0
        // Predicated region
        $region37: #{tpu_custom_call.1} parent=27 // pred_check
          %p215 = pneg %p214
        $region38: #{tpu_custom_call.1} parent=27 // pred_check_branch
          %217 = sbr.rel (%p215) target = $region40
        $region39: #{tpu_custom_call.1} parent=27 // pred_region
          %vm218 = vcmask 257024
          %219 = vst.msk [vmem:[#allocation2] sm:$0xf] %vm218, 0.0
        $region40: #{tpu_custom_call.1} parent=27 // pred_fallthru
          _
        %v220 = vld [vmem:[%s176] sm:$0xf]
        %v221 = vld [vmem:[%s185] sm:$0xf]
        %v222 = vsub.f32 %v220, %v221
        %v223 = vld [vmem:[#allocation2] sm:$0xf]
        %v224 = vmul.f32 %v222, %v222
        %v225 = vadd.f32 %v224, 0.0
        %v226 = vadd.f32 %v223, %v225
        %vm227 = vcmask 257024
        %228 = vst.msk [vmem:[#allocation2] sm:$0xf] %vm227, %v226
        // Predicated region
        $region41: #{tpu_custom_call.1} parent=27 // pred_check
          %p229 = pneg %p214
        $region42: #{tpu_custom_call.1} parent=27 // pred_check_branch
          %231 = sbr.rel (%p229) target = $region44
        $region43: #{tpu_custom_call.1} parent=27 // pred_region
          %v232 = vld [vmem:[#allocation2] sm:$0xf]
          %v233 = vsel %vm227, %v232, 0.0
          %234 = vadd.xlane.f32.xlu0 %v233
          %v235 = vpop.xlane.xlu0 %234
          %v236 = vrot.slane %v235, 4
          %v237 = vadd.f32 %v235, %v236
          %v238 = vrot.slane %v237, 2
          %v239 = vadd.f32 %v237, %v238
          %v240 = vrot.slane %v239, 1
          %v241 = vadd.f32 %v239, %v240
          %s242 = vtos %v241
          %v243 = vstv %s242
          %v244 = vmul.f32 %v243, 0.00390625
          %vm245 = vcmask 0
          %246 = vst.msk [vmem:[%s213] sm:$0x1] %vm245, %v244
        $region44: #{tpu_custom_call.1} parent=27 // pred_fallthru
          _
        %p247 = scmp.lt.s32.totalorder %s23, 1
        %s248 = scalar_select %p247, %s23, 1
        %s249 = scalar_lea.vmem %s2, %s248
        // Predicated region
        $region45: #{tpu_custom_call.1} parent=27 // pred_check
          %p250 = pneg %p105
        $region46: #{tpu_custom_call.1} parent=27 // pred_check_branch
          %252 = sbr.rel (%p250) target = $region48
        $region47: #{tpu_custom_call.1} parent=27 // pred_region
          _
        $region48: #{tpu_custom_call.1} parent=27 // pred_fallthru
          _
      $region28: #{tpu_custom_call.1} parent=5 // pred_fallthru
        _
      %p253 = scmp.le.s32.totalorder 2, %s14
      // Predicated region
      $region49: #{tpu_custom_call.1} parent=5 // pred_check
        %p254 = pneg %p253
      $region50: #{tpu_custom_call.1} parent=5 // pred_check_branch
        %256 = sbr.rel (%p254) target = $region52
      $region51: #{tpu_custom_call.1} parent=5 // pred_region
        %s257 = ssub.s32 %s14, 2
        // Predicated region
        $region53: #{tpu_custom_call.1} parent=51 // pred_check
          %p258 = pneg %p111
        $region54: #{tpu_custom_call.1} parent=51 // pred_check_branch
          %260 = sbr.rel (%p258) target = $region56
        $region55: #{tpu_custom_call.1} parent=51 // pred_region
          %p261 = scmp.lt.s32.totalorder %s25, 1
          %s262 = scalar_select %p261, %s25, 1
          %s263 = scalar_lea.vmem %s2, %s262
        $region56: #{tpu_custom_call.1} parent=51 // pred_fallthru
          _
      $region52: #{tpu_custom_call.1} parent=5 // pred_fallthru
        _
    $region6: #{tpu_custom_call.1} parent=1 // loop_footer
      %s18 = sadd.s32 1, %s14
    $region7: #{tpu_custom_call.1} parent=1 // loop_footer_branch
      %13 = sbr.rel target = $region3
    $region8: #{tpu_custom_call.1} parent=1 // loop_exit
      _
    %264 = vsyncpa [#allocation4], 1
    %s265 = scalar_lea.sflag [#allocation4], 1
    %266 = vsyncpa %s265, 1
    %267 = vsyncpa [#allocation6], 1
    %s268 = scalar_lea.sflag [#allocation6], 1
    %269 = vsyncpa %s268, 1

</llo_original>
